<compile_context>
chip_gen: v5e
topology: v5e:2x2
jax: 0.10.0
libtpu: 0.0.40
codegen_flags: <defaults>
</compile_context>

<pallas_src>
import math

import jax
import jax.numpy as jnp
from jax.experimental import pallas as pl
from jax.experimental.pallas import tpu as pltpu

_LANE = 128


def _adaptive_bounds(o, in_size, out_size):
    """Start/end of the adaptive pooling window (same rule as PyTorch)."""
    start = (o * in_size) // out_size
    end = math.ceil(((o + 1) * in_size) / out_size)
    return start, end


def _make_downsample_kernel(sqrt_L, out_h, out_w, TB):
    """Kernel body. Refs: x_ref (TB, L, TD), o_ref (TB, out_h*out_w, TD),
    row_ref (sqrt_L, TD) VMEM scratch."""
    h_bounds = [_adaptive_bounds(i, sqrt_L, out_h) for i in range(out_h)]
    w_bounds = [_adaptive_bounds(j, sqrt_L, out_w) for j in range(out_w)]

    def kernel(x_ref, o_ref, row_ref):
        def pool_batch(t):
            xb = x_ref.at[t]          # (L, TD) view of one batch's slab
            ob = o_ref.at[t]          # (out_h*out_w, TD) view
            for i in range(out_h):
                h0, h1 = h_bounds[i]
                # Hoisted h-reduction: one full-width (sqrt_L, TD) max chain per
                # output row (VPU, whole vregs), shared by all out_w columns.
                acc = xb[pl.ds(h0 * sqrt_L, sqrt_L), :]
                for h in range(h0 + 1, h1):
                    acc = jnp.maximum(acc, xb[pl.ds(h * sqrt_L, sqrt_L), :])
                # Park the reduced slab in VMEM scratch so the live vreg
                # footprint stays bounded (no sqrt_L x TD value held across j).
                row_ref[...] = acc
                # Per output column: small cross-sublane (XLU) max from scratch;
                # coalesced into a single (out_w, TD) store per output row.
                parts = [
                    jnp.max(row_ref[w0:w1, :], axis=0, keepdims=True)
                    for (w0, w1) in w_bounds
                ]
                ob[pl.ds(i * out_w, out_w), :] = jnp.concatenate(parts, axis=0)

        if TB <= 8:
            # Static unroll: gives the LLO scheduler full visibility.
            for t in range(TB):
                pool_batch(t)
        else:
            # Larger packs: in-kernel loop to avoid code-size blowup.
            @pl.loop(0, TB)
            def _(t):
                pool_batch(t)

    return kernel


def _pick_tiling(B, L, dim, itemsize, *,
                 block_target_bytes=2 << 20, vmem_soft_bytes=12 << 20):
    """Choose (lane tile TD, padded dim, batches-per-block TB).

    Prefers TD == dim (one contiguous DMA per block, no wrapper pad) and grows the
    per-grid-step block toward ~2 MiB by packing batches, while keeping the
    double-buffered pipeline under a v5e-safe VMEM budget (scoped default 16 MiB).
    """
    def fits(td):
        return 2 * L * td * itemsize <= vmem_soft_bytes

    dim_p = dim
    if fits(dim):
        TD = dim                       # full lane width: contiguous block DMA
    else:
        TD = None
        for cand in (1024, 512, 384, 256, 128):
            if dim % cand == 0 and fits(cand):
                TD = cand
                break
        if TD is None:
            # TODO(synk): rare fallback (huge L, awkward dim): pad + 128-lane tiles.
            dim_p = ((dim + _LANE - 1) // _LANE) * _LANE
            TD = _LANE

    per_batch_bytes = L * TD * itemsize
    TB = max(1, min(B, block_target_bytes // per_batch_bytes))
    while TB > 1 and 2 * TB * per_batch_bytes > vmem_soft_bytes:
        TB -= 1
    while B % TB != 0:                 # keep blocks whole (no partial batch blocks)
        TB -= 1

    # Keep the grid >= 2 steps when possible so both v7x TensorCores get work.
    n_dim_tiles = dim_p // TD
    if (B // TB) * n_dim_tiles < 2 and B > 1:
        TB = max(1, B // 2)
        while B % TB != 0:
            TB -= 1

    return TD, dim_p, TB


def downsample(x, output_size):
    """x: (B, L, dim) with L a perfect square. Returns (B, out_h*out_w, dim)."""
    B, L, dim = x.shape
    sqrt_L = math.isqrt(L)
    assert sqrt_L * sqrt_L == L, "L must be a perfect square"
    out_h, out_w = output_size
    n_out = out_h * out_w
    itemsize = jnp.dtype(x.dtype).itemsize

    TD, dim_p, TB = _pick_tiling(B, L, dim, itemsize)
    if dim_p != dim:                   # rare fallback path only
        x = jnp.pad(x, ((0, 0), (0, 0), (0, dim_p - dim)))

    n_dim_tiles = dim_p // TD
    grid = (B // TB, n_dim_tiles)

    kernel = _make_downsample_kernel(sqrt_L, out_h, out_w, TB)

    in_block_bytes = TB * L * TD * itemsize
    out_block_bytes = TB * n_out * TD * itemsize
    scratch_bytes = sqrt_L * TD * itemsize
    pipeline_bytes = 2 * (in_block_bytes + out_block_bytes) + scratch_bytes
    vmem_limit = int(min(max(2 * pipeline_bytes, 16 << 20), 48 << 20))

    cost = pl.CostEstimate(
        flops=B * L * dim,             # ~one max comparison per input element
        transcendentals=0,
        bytes_accessed=(B * L * dim + B * n_out * dim) * itemsize,
    )

    out = pl.pallas_call(
        kernel,
        out_shape=jax.ShapeDtypeStruct((B, n_out, dim_p), x.dtype),
        grid=grid,
        in_specs=[pl.BlockSpec((TB, L, TD), lambda b, d: (b, 0, d))],
        out_specs=pl.BlockSpec((TB, n_out, TD), lambda b, d: (b, 0, d)),
        scratch_shapes=[pltpu.VMEM((sqrt_L, TD), x.dtype)],
        compiler_params=pltpu.CompilerParams(
            dimension_semantics=("parallel", "parallel"),
            vmem_limit_bytes=vmem_limit,
        ),
        cost_estimate=cost,
    )(x)

    if dim_p != dim:
        out = out[:, :, :dim]
    return out


def _reference_downsample(x, output_size):
    """Pure-JAX reference matching the PyTorch forward exactly."""
    B, L, dim = x.shape
    sqrt_L = math.isqrt(L)
    out_h, out_w = output_size
    xi = jnp.transpose(x, (0, 2, 1)).reshape(B, dim, sqrt_L, sqrt_L)
    cols = []
    for i in range(out_h):
        h0, h1 = _adaptive_bounds(i, sqrt_L, out_h)
        for j in range(out_w):
            w0, w1 = _adaptive_bounds(j, sqrt_L, out_w)
            cols.append(xi[:, :, h0:h1, w0:w1].max(axis=(2, 3)))
    out = jnp.stack(cols, axis=-1)              # (B, dim, n_out)
    return jnp.transpose(out, (0, 2, 1))        # (B, n_out, dim)


if __name__ == "__main__":
    key = jax.random.PRNGKey(0)

    # 1) Uniform windows, full-dim lane width < 128 (no pad): 4x4 -> 2x2, dim=32.
    x1 = jax.random.normal(key, (2, 16, 32), dtype=jnp.float32)
    out1 = jax.block_until_ready(downsample(x1, (2, 2)))
    ref1 = _reference_downsample(x1, (2, 2))
    assert out1.shape == (2, 4, 32)
    assert jnp.allclose(out1, ref1), "mismatch vs reference (uniform path)"

    # 2) General adaptive (overlapping, uneven) windows: 5x5 -> 2x2.
    x2 = jax.random.normal(jax.random.fold_in(key, 1), (2, 25, 32), dtype=jnp.float32)
    out2 = jax.block_until_ready(downsample(x2, (2, 2)))
    ref2 = _reference_downsample(x2, (2, 2))
    assert jnp.allclose(out2, ref2), "mismatch vs reference (adaptive path)"

    # 3) Wide dim (1024) kept as a single full-width contiguous block per batch.
    x3 = jax.random.normal(jax.random.fold_in(key, 2), (2, 16, 1024), dtype=jnp.float32)
    out3 = jax.block_until_ready(downsample(x3, (2, 2)))
    ref3 = _reference_downsample(x3, (2, 2))
    assert jnp.allclose(out3, ref3), "mismatch vs reference (wide dim)"

    # 4) Batch packing, static-unroll path (TB=4, grid of 2 steps).
    x4 = jax.random.normal(jax.random.fold_in(key, 3), (8, 16, 32), dtype=jnp.float32)
    out4 = jax.block_until_ready(downsample(x4, (2, 2)))
    ref4 = _reference_downsample(x4, (2, 2))
    assert jnp.allclose(out4, ref4), "mismatch vs reference (batch pack, unrolled)"

    # 5) Batch packing, in-kernel pl.loop path (TB=32 > 8).
    x5 = jax.random.normal(jax.random.fold_in(key, 4), (64, 16, 32), dtype=jnp.float32)
    out5 = jax.block_until_ready(downsample(x5, (2, 2)))
    ref5 = _reference_downsample(x5, (2, 2))
    assert jnp.allclose(out5, ref5), "mismatch vs reference (batch pack, pl.loop)"

    print("KERNEL_OK")
</pallas_src>

<mosaic_0001>
module attributes {stable_mosaic.version = 11 : i64} {
  func.func @kernel(%arg0: i32, %arg1: i32, %arg2: memref<1x16x32xf32, #tpu.memory_space<vmem>>, %arg3: memref<1x4x32xf32, #tpu.memory_space<vmem>>, %arg4: memref<4x32xf32, #tpu.memory_space<vmem>>) attributes {dimension_semantics = [#tpu.dimension_semantics<parallel>, #tpu.dimension_semantics<parallel>], iteration_bounds = array<i64: 2, 1>, scalar_prefetch = 0 : i64, scratch_operands = 1 : i64, tpu.core_type = #tpu.core_type<tc>, window_params = [{transform_indices = @transform_0, window_bounds = array<i64: 1, 16, 32>}, {transform_indices = @transform_1, window_bounds = array<i64: 1, 4, 32>}]} {
    %c0_i32 = arith.constant 0 : i32
    %c0_i32_0 = arith.constant 0 : i32
    %c0_i32_1 = arith.constant 0 : i32
    %0 = tpu.memref_slice %arg2[%c0_i32, %c0_i32_0, %c0_i32_1] : memref<1x16x32xf32, #tpu.memory_space<vmem>> -> memref<1x16x32xf32, #tpu.memory_space<vmem>>
    %1 = tpu.memref_squeeze %0 : memref<1x16x32xf32, #tpu.memory_space<vmem>> -> memref<16x32xf32, #tpu.memory_space<vmem>>
    %c0 = arith.constant 0 : index
    %c0_2 = arith.constant 0 : index
    %2 = vector.load %1[%c0, %c0_2] : memref<16x32xf32, #tpu.memory_space<vmem>>, vector<4x32xf32>
    %c0_i32_3 = arith.constant 0 : i32
    %c0_i32_4 = arith.constant 0 : i32
    %c0_i32_5 = arith.constant 0 : i32
    %3 = tpu.memref_slice %arg2[%c0_i32_3, %c0_i32_4, %c0_i32_5] : memref<1x16x32xf32, #tpu.memory_space<vmem>> -> memref<1x16x32xf32, #tpu.memory_space<vmem>>
    %4 = tpu.memref_squeeze %3 : memref<1x16x32xf32, #tpu.memory_space<vmem>> -> memref<16x32xf32, #tpu.memory_space<vmem>>
    %c4 = arith.constant 4 : index
    %c0_6 = arith.constant 0 : index
    %5 = vector.load %4[%c4, %c0_6] : memref<16x32xf32, #tpu.memory_space<vmem>>, vector<4x32xf32>
    %6 = arith.maximumf %2, %5 : vector<4x32xf32>
    %c0_7 = arith.constant 0 : index
    %c0_8 = arith.constant 0 : index
    %7 = vector.load %arg4[%c0_7, %c0_8] : memref<4x32xf32, #tpu.memory_space<vmem>>, vector<4x32xf32>
    tpu.vector_store %arg4[%c0_7, %c0_8], %6 {strides = array<i32>} : memref<4x32xf32, #tpu.memory_space<vmem>>, vector<4x32xf32>,
    %c0_9 = arith.constant 0 : index
    %c0_10 = arith.constant 0 : index
    %8 = vector.load %arg4[%c0_9, %c0_10] : memref<4x32xf32, #tpu.memory_space<vmem>>, vector<2x32xf32>
    %cst = arith.constant dense<0xFF800000> : vector<32xf32>
    %9 = vector.multi_reduction <maximumf>, %8, %cst [0] : vector<2x32xf32> to vector<32xf32>
    %10 = vector.shape_cast %9 : vector<32xf32> to vector<1x32xf32>
    %c2 = arith.constant 2 : index
    %c0_11 = arith.constant 0 : index
    %11 = vector.load %arg4[%c2, %c0_11] : memref<4x32xf32, #tpu.memory_space<vmem>>, vector<2x32xf32>
    %cst_12 = arith.constant dense<0xFF800000> : vector<32xf32>
    %12 = vector.multi_reduction <maximumf>, %11, %cst_12 [0] : vector<2x32xf32> to vector<32xf32>
    %13 = vector.shape_cast %12 : vector<32xf32> to vector<1x32xf32>
    %14 = tpu.concatenate %10, %13 in 0 : vector<1x32xf32>, vector<1x32xf32> -> vector<2x32xf32>
    %c0_i32_13 = arith.constant 0 : i32
    %c0_i32_14 = arith.constant 0 : i32
    %c0_i32_15 = arith.constant 0 : i32
    %15 = tpu.memref_slice %arg3[%c0_i32_13, %c0_i32_14, %c0_i32_15] : memref<1x4x32xf32, #tpu.memory_space<vmem>> -> memref<1x4x32xf32, #tpu.memory_space<vmem>>
    %16 = tpu.memref_squeeze %15 : memref<1x4x32xf32, #tpu.memory_space<vmem>> -> memref<4x32xf32, #tpu.memory_space<vmem>>
    %c0_16 = arith.constant 0 : index
    %c0_17 = arith.constant 0 : index
    %17 = vector.load %16[%c0_16, %c0_17] : memref<4x32xf32, #tpu.memory_space<vmem>>, vector<2x32xf32>
    tpu.vector_store %16[%c0_16, %c0_17], %14 {strides = array<i32>} : memref<4x32xf32, #tpu.memory_space<vmem>>, vector<2x32xf32>,
    %c0_i32_18 = arith.constant 0 : i32
    %c0_i32_19 = arith.constant 0 : i32
    %c0_i32_20 = arith.constant 0 : i32
    %18 = tpu.memref_slice %arg2[%c0_i32_18, %c0_i32_19, %c0_i32_20] : memref<1x16x32xf32, #tpu.memory_space<vmem>> -> memref<1x16x32xf32, #tpu.memory_space<vmem>>
    %19 = tpu.memref_squeeze %18 : memref<1x16x32xf32, #tpu.memory_space<vmem>> -> memref<16x32xf32, #tpu.memory_space<vmem>>
    %c8 = arith.constant 8 : index
    %c0_21 = arith.constant 0 : index
    %20 = vector.load %19[%c8, %c0_21] : memref<16x32xf32, #tpu.memory_space<vmem>>, vector<4x32xf32>
    %c0_i32_22 = arith.constant 0 : i32
    %c0_i32_23 = arith.constant 0 : i32
    %c0_i32_24 = arith.constant 0 : i32
    %21 = tpu.memref_slice %arg2[%c0_i32_22, %c0_i32_23, %c0_i32_24] : memref<1x16x32xf32, #tpu.memory_space<vmem>> -> memref<1x16x32xf32, #tpu.memory_space<vmem>>
    %22 = tpu.memref_squeeze %21 : memref<1x16x32xf32, #tpu.memory_space<vmem>> -> memref<16x32xf32, #tpu.memory_space<vmem>>
    %c12 = arith.constant 12 : index
    %c0_25 = arith.constant 0 : index
    %23 = vector.load %22[%c12, %c0_25] : memref<16x32xf32, #tpu.memory_space<vmem>>, vector<4x32xf32>
    %24 = arith.maximumf %20, %23 : vector<4x32xf32>
    %c0_26 = arith.constant 0 : index
    %c0_27 = arith.constant 0 : index
    %25 = vector.load %arg4[%c0_26, %c0_27] : memref<4x32xf32, #tpu.memory_space<vmem>>, vector<4x32xf32>
    tpu.vector_store %arg4[%c0_26, %c0_27], %24 {strides = array<i32>} : memref<4x32xf32, #tpu.memory_space<vmem>>, vector<4x32xf32>,
    %c0_28 = arith.constant 0 : index
    %c0_29 = arith.constant 0 : index
    %26 = vector.load %arg4[%c0_28, %c0_29] : memref<4x32xf32, #tpu.memory_space<vmem>>, vector<2x32xf32>
    %cst_30 = arith.constant dense<0xFF800000> : vector<32xf32>
    %27 = vector.multi_reduction <maximumf>, %26, %cst_30 [0] : vector<2x32xf32> to vector<32xf32>
    %28 = vector.shape_cast %27 : vector<32xf32> to vector<1x32xf32>
    %c2_31 = arith.constant 2 : index
    %c0_32 = arith.constant 0 : index
    %29 = vector.load %arg4[%c2_31, %c0_32] : memref<4x32xf32, #tpu.memory_space<vmem>>, vector<2x32xf32>
    %cst_33 = arith.constant dense<0xFF800000> : vector<32xf32>
    %30 = vector.multi_reduction <maximumf>, %29, %cst_33 [0] : vector<2x32xf32> to vector<32xf32>
    %31 = vector.shape_cast %30 : vector<32xf32> to vector<1x32xf32>
    %32 = tpu.concatenate %28, %31 in 0 : vector<1x32xf32>, vector<1x32xf32> -> vector<2x32xf32>
    %c0_i32_34 = arith.constant 0 : i32
    %c0_i32_35 = arith.constant 0 : i32
    %c0_i32_36 = arith.constant 0 : i32
    %33 = tpu.memref_slice %arg3[%c0_i32_34, %c0_i32_35, %c0_i32_36] : memref<1x4x32xf32, #tpu.memory_space<vmem>> -> memref<1x4x32xf32, #tpu.memory_space<vmem>>
    %34 = tpu.memref_squeeze %33 : memref<1x4x32xf32, #tpu.memory_space<vmem>> -> memref<4x32xf32, #tpu.memory_space<vmem>>
    %c2_37 = arith.constant 2 : index
    %c0_38 = arith.constant 0 : index
    %35 = vector.load %34[%c2_37, %c0_38] : memref<4x32xf32, #tpu.memory_space<vmem>>, vector<2x32xf32>
    tpu.vector_store %34[%c2_37, %c0_38], %32 {strides = array<i32>} : memref<4x32xf32, #tpu.memory_space<vmem>>, vector<2x32xf32>,
    return
  }
  func.func @transform_0(%arg0: i32, %arg1: i32) -> (i32, i32, i32) {
    %c0_i32 = arith.constant 0 : i32
    %c0_i32_0 = arith.constant 0 : i32
    return %arg0, %c0_i32, %arg1 : i32, i32, i32
  }
  func.func @transform_1(%arg0: i32, %arg1: i32) -> (i32, i32, i32) {
    %c0_i32 = arith.constant 0 : i32
    %c0_i32_0 = arith.constant 0 : i32
    return %arg0, %c0_i32, %arg1 : i32, i32, i32
  }
}

</mosaic_0001>

<llo_original>
// kernel: tpu_custom_call.1
$region0: #{tpu_custom_call.1}
  #allocation0 [shape = 'u32[]', space=smem, size = 0x4, offset = 0x4, fixed_abs, tag = 'smem constant byte address 0x4 - core index']
  #allocation1 [shape = 'u32[72,128]{1,0:T(1,128)}', space=vmem, size = 0x9000, scoped, tag = 'internal scratch']
  #allocation2 [shape = 'f32[4,32]{1,0:T(4,128)}', space=vmem, size = 0x800, scoped, tag = 'scratch operand']
  %s0 = inlined_call_operand.hbm [shape: f32[2,16,32], index: 0, kind: input, shape index: {}]
  %s1 = inlined_call_operand.hbm [shape: f32[2,4,32], index: 1, kind: output, shape index: {}]
  %s2 = sld [smem:[#allocation0]]
  $region41: #{tpu_custom_call.1} parent=0
    _
  %s4 = ssub.s32 1, %s2
  %s5 = scalar_select 0, %s4, %s2
  $region1: #{tpu_custom_call.1} parent=0
    #allocation3 [shape = 'u8[16384]{0}', space=vmem, size = 0x4000, scoped, tag = 'input window, operand 0']
    #allocation4 [shape = 's32[2]{0}', space=sflag, size = 0x8, scoped, tag = 'scoped memory for tpu_custom_call.1']
    #allocation5 [shape = 's32[2]{0}', space=sflag, size = 0x8, scoped, tag = 'scoped memory for tpu_custom_call.1']
    #allocation6 [shape = 'u8[4096]{0}', space=vmem, size = 0x1000, scoped, tag = 'output window, operand 0']
    %6 = vsyncpa [#allocation4], 0
    %s7 = scalar_lea.sflag [#allocation4], 1
    %8 = vsyncpa %s7, 0
    %9 = vsyncpa [#allocation5], 0
    %s10 = scalar_lea.sflag [#allocation5], 1
    %11 = vsyncpa %s10, 0
    loop: start=0, step=1, limit=4
    $region2: #{tpu_custom_call.1} parent=1 // loop_pre_header
      _
    $region3: #{tpu_custom_call.1} parent=1 // loop_header
      %s13 = sphi 0, %s17
      %p14 = scmp.ge.s32.totalorder %s13, 4
      %s20 = sphi 0, %s32
      %s21 = sphi 0, %s28
      %s22 = sphi 0, %s20
      %s23 = sphi 0, %s21
      %s24 = sphi 0, %s22
      %s25 = sphi 0, %s23
      %s37 = sphi 0, %s39
      %s40 = sphi 0, %s37
      %s41 = sphi 0, %s40
      %s57 = sphi 0, %s41
      %s65 = sphi 0, %s67
      %s68 = sphi 0, %s65
      %s69 = sphi 0, %s68
      %s85 = sphi 0, %s69
    $region4: #{tpu_custom_call.1} parent=1 // loop_header_branch
      %16 = sbr.rel (%p14) target = $region8
    $region5: #{tpu_custom_call.1} parent=1 // loop_body
      %s18 = ssub.s32 %s13, 1
      %s19 = ssub.s32 %s13, 2
      %s26 = sadd.s32 1, %s21
      %p27 = scmp.ge.s32.totalorder %s26, 1
      %s28 = scalar_select %p27, 0, %s26
      %s29 = sadd.s32 1, %s20
      %s30 = scalar_select %p27, %s29, %s20
      %p31 = scmp.ge.s32.totalorder %s30, 2
      %s32 = scalar_select %p31, 0, %s30
      %s33 = ssub.s32 %s20, %s32
      %s34 = ssub.s32 %s21, %s28
      %s35 = sor.u32 %s33, %s34
      %p36 = scmp.eq.s32.totalorder %s35, 0
      %s38 = sadd.s32 %s37, 1
      %s39 = scalar_select %p36, %s37, %s38
      %p42 = pneg %p36
      %p43 = scmp.eq.s32.totalorder %s13, 1
      %p44 = por %p42, %p43
      %p45 = scmp.ne.s32.totalorder %s37, %s40
      %p46 = scmp.eq.s32.totalorder %s13, 0
      %p47 = por %p45, %p46
      %p48 = scmp.ne.s32.totalorder %s37, %s40
      %p49 = scmp.eq.s32.totalorder %s18, 1
      %p50 = por %p48, %p49
      %p51 = scmp.ne.s32.totalorder %s40, %s41
      %p52 = scmp.eq.s32.totalorder %s18, 0
      %p53 = por %p51, %p52
      %p54 = scmp.ne.s32.totalorder %s40, %s41
      %p55 = scmp.eq.s32.totalorder %s19, 1
      %p56 = por %p54, %p55
      %p58 = scmp.ne.s32.totalorder %s41, %s57
      %p59 = scmp.eq.s32.totalorder %s19, 0
      %p60 = por %p58, %p59
      %s61 = ssub.s32 %s20, %s32
      %s62 = ssub.s32 %s21, %s28
      %s63 = sor.u32 %s61, %s62
      %p64 = scmp.eq.s32.totalorder %s63, 0
      %s66 = sadd.s32 %s65, 1
      %s67 = scalar_select %p64, %s65, %s66
      %p70 = pneg %p64
      %p71 = scmp.eq.s32.totalorder %s13, 1
      %p72 = por %p70, %p71
      %p73 = scmp.ne.s32.totalorder %s65, %s68
      %p74 = scmp.eq.s32.totalorder %s13, 0
      %p75 = por %p73, %p74
      %p76 = scmp.ne.s32.totalorder %s65, %s68
      %p77 = scmp.eq.s32.totalorder %s18, 1
      %p78 = por %p76, %p77
      %p79 = scmp.ne.s32.totalorder %s68, %s69
      %p80 = scmp.eq.s32.totalorder %s18, 0
      %p81 = por %p79, %p80
      %p82 = scmp.ne.s32.totalorder %s68, %s69
      %p83 = scmp.eq.s32.totalorder %s19, 1
      %p84 = por %p82, %p83
      %p86 = scmp.ne.s32.totalorder %s69, %s85
      %p87 = scmp.eq.s32.totalorder %s19, 0
      %p88 = por %p86, %p87
      %p89 = scmp.le.s32.totalorder 1, %s13
      %p90 = scmp.lt.s32.totalorder %s13, 3
      %p91 = pnand %p89, %p90
      %p92 = pneg %p91
      // Predicated region
      $region9: #{tpu_custom_call.1} parent=5 // pred_check
        _
      $region10: #{tpu_custom_call.1} parent=5 // pred_check_branch
        %94 = sbr.rel (%p91) target = $region12
      $region11: #{tpu_custom_call.1} parent=5 // pred_region
        %s95 = ssub.s32 %s13, 1
      $region12: #{tpu_custom_call.1} parent=5 // pred_fallthru
        _
      %p96 = scmp.lt.s32.totalorder %s13, 2
      // Predicated region
      $region13: #{tpu_custom_call.1} parent=5 // pred_check
        %p97 = pneg %p96
      $region14: #{tpu_custom_call.1} parent=5 // pred_check_branch
        %99 = sbr.rel (%p97) target = $region16
      $region15: #{tpu_custom_call.1} parent=5 // pred_region
        // Predicated region
        $region17: #{tpu_custom_call.1} parent=15 // pred_check
          %p100 = pneg %p47
        $region18: #{tpu_custom_call.1} parent=15 // pred_check_branch
          %102 = sbr.rel (%p100) target = $region20
        $region19: #{tpu_custom_call.1} parent=15 // pred_region
          %s103 = sand.u32 %s37, 1
          %s104 = scalar_lea.sflag [#allocation4], %s103
          %s105 = sand.u32 %s37, 1
          %s106 = smul.addr %s105, 16
          %s107 = scalar_lea.vmem [#allocation3], %s106
          %109 = vsyncadd %s104, 0
          %s110 = smul.addr %s20, 2
          %s111 = sadd.s32 %s21, %s110
          %s112 = smul.addr %s111, 8
          %s113 = scalar_lea.hbm %s0, %s112
          %s114 = sshll.u32 %s113, 4
          %s115 = int_to_ptr.hbm [resolvable:$true] %s114
          %s116 = sshll.u32 %s107, 4
          %s117 = int_to_ptr.vmem [resolvable:$true] %s116
          %122 = dma.hbm_to_vmem [thread:$0]  %s115, 256, %s117, %s104, 128, 128, 8
        $region20: #{tpu_custom_call.1} parent=15 // pred_fallthru
          _
      $region16: #{tpu_custom_call.1} parent=5 // pred_fallthru
        _
      %p123 = scmp.le.s32.totalorder 1, %s13
      %p124 = scmp.lt.s32.totalorder %s13, 3
      %p125 = pnand %p123, %p124
      %p126 = pneg %p125
      // Predicated region
      $region21: #{tpu_custom_call.1} parent=5 // pred_check
        _
      $region22: #{tpu_custom_call.1} parent=5 // pred_check_branch
        %128 = sbr.rel (%p125) target = $region24
      $region23: #{tpu_custom_call.1} parent=5 // pred_region
        %s129 = ssub.s32 %s13, 1
        %s130 = sand.u32 %s40, 1
        %s131 = scalar_lea.sflag [#allocation4], %s130
        %s132 = sand.u32 %s40, 1
        %s133 = smul.addr %s132, 16
        %s134 = scalar_lea.vmem [#allocation3], %s133
        // Predicated region
        $region25: #{tpu_custom_call.1} parent=23 // pred_check
          %p135 = pneg %p53
        $region26: #{tpu_custom_call.1} parent=23 // pred_check_branch
          %137 = sbr.rel (%p135) target = $region28
        $region27: #{tpu_custom_call.1} parent=23 // pred_region
          %139 = dma.done %s131, 256
        $region28: #{tpu_custom_call.1} parent=23 // pred_fallthru
          _
        %s140 = sand.u32 %s40, 1
        %s141 = scalar_lea.sflag [#allocation4], %s140
        %s142 = sand.u32 %s40, 1
        %s143 = smul.addr %s142, 16
        %s144 = scalar_lea.vmem [#allocation3], %s143
        %p145 = pneg %p53
        %p146 = pneg %p50
        %p147 = pneg %p81
        %p148 = pneg %p78
        %s149 = sand.u32 %s68, 1
        %s150 = scalar_lea.sflag [#allocation5], %s149
        %s151 = sand.u32 %s68, 1
        %s152 = smul.addr %s151, 4
        %s153 = scalar_lea.vmem [#allocation6], %s152
        %v154 = vld [vmem:[%s134] sm:$0xf]
        %v155 = vld [vmem:[%s134 + $0x4] sm:$0xf]
        %v156 = vmax.f32 %v154, %v155
        %vm157 = vcmask 257024
        %158 = vst.msk [vmem:[#allocation2] sm:$0xf] %vm157, %v156
        %v159 = vld [vmem:[#allocation2] sm:$0x3]
        %vm160 = vcmask 254976
        %v161 = vsel %vm160, %v159, -inf
        %v162 = vrot.slane %v161, 4
        %v163 = vmax.f32 %v161, %v162
        %v164 = vrot.slane %v163, 2
        %v165 = vmax.f32 %v163, %v164
        %v166 = vrot.slane %v165, 1
        %v167 = vmax.f32 %v165, %v166
        %v168 = vld [vmem:[#allocation2 + $0x2] sm:$0x3]
        %v169 = vsel %vm160, %v168, -inf
        %v170 = vrot.slane %v169, 4
        %v171 = vmax.f32 %v169, %v170
        %v172 = vrot.slane %v171, 2
        %v173 = vmax.f32 %v171, %v172
        %v174 = vrot.slane %v173, 1
        %v175 = vmax.f32 %v173, %v174
        %vm176 = vcmask 1040384
        %v177 = vsel %vm176, %v167, %v175
        %178 = vst.msk [vmem:[%s153] sm:$0x3] %vm160, %v177
        %v179 = vld [vmem:[%s134 + $0x8] sm:$0xf]
        %v180 = vld [vmem:[%s134 + $0xc] sm:$0xf]
        %v181 = vmax.f32 %v179, %v180
        %182 = vst.msk [vmem:[#allocation2] sm:$0xf] %vm157, %v181
        %v183 = vld [vmem:[#allocation2] sm:$0x3]
        %v184 = vsel %vm160, %v183, -inf
        %v185 = vrot.slane %v184, 4
        %v186 = vmax.f32 %v184, %v185
        %v187 = vrot.slane %v186, 2
        %v188 = vmax.f32 %v186, %v187
        %v189 = vrot.slane %v188, 1
        %v190 = vmax.f32 %v188, %v189
        %v191 = vld [vmem:[#allocation2 + $0x2] sm:$0x3]
        %v192 = vsel %vm160, %v191, -inf
        %v193 = vrot.slane %v192, 4
        %v194 = vmax.f32 %v192, %v193
        %v195 = vrot.slane %v194, 2
        %v196 = vmax.f32 %v194, %v195
        %v197 = vrot.slane %v196, 1
        %v198 = vmax.f32 %v196, %v197
        %v199 = vsel %vm176, %v190, %v198
        %200 = vst.msk [vmem:[%s153 + $0x2] sm:$0x3] %vm160, %v199
        %s201 = sand.u32 %s68, 1
        %s202 = scalar_lea.sflag [#allocation5], %s201
        %s203 = sand.u32 %s68, 1
        %s204 = smul.addr %s203, 4
        %s205 = scalar_lea.vmem [#allocation6], %s204
        // Predicated region
        $region29: #{tpu_custom_call.1} parent=23 // pred_check
          %p206 = pneg %p78
        $region30: #{tpu_custom_call.1} parent=23 // pred_check_branch
          %208 = sbr.rel (%p206) target = $region32
        $region31: #{tpu_custom_call.1} parent=23 // pred_region
          %210 = vsyncadd %s202, 0
          %s211 = sadd.s32 %s23, %s22
          %s212 = smul.addr %s211, 4
          %s213 = scalar_lea.hbm %s1, %s212
          %s215 = sshll.u32 %s205, 4
          %s216 = int_to_ptr.vmem [resolvable:$true] %s215
          %s217 = sshll.u32 %s213, 4
          %s218 = int_to_ptr.hbm [resolvable:$true] %s217
          %220 = dma.vmem_to_hbm [thread:$0]  %s216, 64, %s218, %s202
        $region32: #{tpu_custom_call.1} parent=23 // pred_fallthru
          _
      $region24: #{tpu_custom_call.1} parent=5 // pred_fallthru
        _
      %p221 = scmp.le.s32.totalorder 2, %s13
      // Predicated region
      $region33: #{tpu_custom_call.1} parent=5 // pred_check
        %p222 = pneg %p221
      $region34: #{tpu_custom_call.1} parent=5 // pred_check_branch
        %224 = sbr.rel (%p222) target = $region36
      $region35: #{tpu_custom_call.1} parent=5 // pred_region
        %s225 = ssub.s32 %s13, 2
        // Predicated region
        $region37: #{tpu_custom_call.1} parent=35 // pred_check
          %p226 = pneg %p84
        $region38: #{tpu_custom_call.1} parent=35 // pred_check_branch
          %228 = sbr.rel (%p226) target = $region40
        $region39: #{tpu_custom_call.1} parent=35 // pred_region
          %s229 = sand.u32 %s69, 1
          %s230 = scalar_lea.sflag [#allocation5], %s229
          %s231 = sand.u32 %s69, 1
          %s232 = smul.addr %s231, 4
          %s233 = scalar_lea.vmem [#allocation6], %s232
          %235 = dma.done %s230, 64
        $region40: #{tpu_custom_call.1} parent=35 // pred_fallthru
          _
      $region36: #{tpu_custom_call.1} parent=5 // pred_fallthru
        _
    $region6: #{tpu_custom_call.1} parent=1 // loop_footer
      %s17 = sadd.s32 1, %s13
    $region7: #{tpu_custom_call.1} parent=1 // loop_footer_branch
      %12 = sbr.rel target = $region3
    $region8: #{tpu_custom_call.1} parent=1 // loop_exit
      _
    %236 = vsyncpa [#allocation4], 1
    %s237 = scalar_lea.sflag [#allocation4], 1
    %238 = vsyncpa %s237, 1
    %239 = vsyncpa [#allocation5], 1
    %s240 = scalar_lea.sflag [#allocation5], 1
    %241 = vsyncpa %s240, 1

</llo_original>
